<compile_context>
chip_gen: v6e
topology: v6e:2x2x1
jax: 0.10.0
libtpu: 0.0.40
codegen_flags: <defaults>
</compile_context>

<pallas_src>
import jax
import jax.numpy as jnp
from jax.experimental import pallas as pl
from jax.experimental.pallas import tpu as pltpu


def _identity_kernel(x_ref, o_ref):
    # Hot path: straight VMEM tile copy (elementwise identity).
    o_ref[...] = x_ref[...]


def pass_forward_reference(x):
    """What production code should do for an identity Pass: zero work."""
    return x


def _vmem_capacity_bytes():
    try:
        return pltpu.get_tpu_info().vmem_capacity_bytes
    except Exception:
        # Conservative default = v7x per-TensorCore VMEM.
        return 64 << 20


def _lane_dense_2d(shape):
    """Pick a (rows, cols) view with cols a large multiple of 128 if possible."""
    total = 1
    for d in shape:
        total *= d
    for cols in (4096, 2048, 1024, 512, 256, 128):
        if total % cols == 0:
            return total // cols, cols
    # Fallback: keep the original last dim as lanes (block cols == full dim).
    last = shape[-1] if len(shape) >= 1 else 1
    return max(1, total // last), last


def _pick_tile_rows(rows, cols, itemsize, vmem_bytes):
    """Block rows targeting ~1-4 MiB per block, capped by this chip's VMEM."""
    # in + out blocks, each double-buffered => ~4x block bytes resident.
    max_block_bytes = min(4 << 20, vmem_bytes // 8)
    # Multiple of the packed-sublane count (8 f32 / 16 bf16 / 32 int8-fp8).
    sub = max(8, 32 // max(1, itemsize))
    t = (max_block_bytes // max(1, cols * itemsize)) // sub * sub
    t = max(sub, t)
    return rows if t >= rows else t


def pass_forward(x):
    """Pallas equivalent of Pass.forward: return x unchanged (aliased copy)."""
    orig_shape = x.shape
    if x.size == 0:
        return x

    rows, cols = _lane_dense_2d(orig_shape)
    x2 = x.reshape(rows, cols)  # contiguous flatten: free bitcast

    itemsize = jnp.dtype(x.dtype).itemsize
    vmem_bytes = _vmem_capacity_bytes()
    tile_rows = _pick_tile_rows(rows, cols, itemsize, vmem_bytes)
    grid = (pl.cdiv(rows, tile_rows),)

    # Explicit VMEM budget: above v5e's 16 MiB scoped default, with headroom
    # on v7x's 64 MiB physical VMEM.
    vmem_limit_bytes = min(64 << 20, vmem_bytes // 2)

    out = pl.pallas_call(
        _identity_kernel,
        out_shape=jax.ShapeDtypeStruct((rows, cols), x.dtype),
        grid_spec=pl.GridSpec(
            grid=grid,
            in_specs=[pl.BlockSpec((tile_rows, cols), lambda i: (i, 0))],
            out_specs=pl.BlockSpec((tile_rows, cols), lambda i: (i, 0)),
        ),
        # Output buffer IS the input buffer: no second HBM allocation.
        input_output_aliases={0: 0},
        compiler_params=pltpu.CompilerParams(
            dimension_semantics=("parallel",),
            vmem_limit_bytes=vmem_limit_bytes,
        ),
    )(x2)

    return out.reshape(orig_shape)


if __name__ == "__main__":
    import numpy as np

    key = jax.random.PRNGKey(0)
    # Small NCHW input consistent with a typical conv-style module input.
    x = jax.random.normal(key, (2, 4, 16, 16), dtype=jnp.float32)
    x_host = np.asarray(x)  # host copy for verification (input gets donated)

    # Donate the input so input_output_aliases is a true in-place alias.
    fwd = jax.jit(pass_forward, donate_argnums=(0,))
    y = fwd(x)
    jax.block_until_ready(y)

    assert y.shape == x_host.shape and y.dtype == x_host.dtype
    assert np.array_equal(np.asarray(y), x_host)
    print("KERNEL_OK")
</pallas_src>

<mosaic_0001>
module attributes {stable_mosaic.version = 11 : i64} {
  func.func @_identity_kernel(%arg0: i32, %arg1: memref<1x2048xf32, #tpu.memory_space<vmem>>, %arg2: memref<1x2048xf32, #tpu.memory_space<vmem>>) attributes {dimension_semantics = [#tpu.dimension_semantics<parallel>], iteration_bounds = array<i64: 1>, scalar_prefetch = 0 : i64, scratch_operands = 0 : i64, tpu.core_type = #tpu.core_type<tc>, window_params = [{transform_indices = @transform_0, window_bounds = array<i64: 1, 2048>}, {transform_indices = @transform_1, window_bounds = array<i64: 1, 2048>}]} {
    %c0 = arith.constant 0 : index
    %c0_0 = arith.constant 0 : index
    %0 = vector.load %arg1[%c0, %c0_0] : memref<1x2048xf32, #tpu.memory_space<vmem>>, vector<1x2048xf32>
    %c0_1 = arith.constant 0 : index
    %c0_2 = arith.constant 0 : index
    %1 = vector.load %arg2[%c0_1, %c0_2] : memref<1x2048xf32, #tpu.memory_space<vmem>>, vector<1x2048xf32>
    tpu.vector_store %arg2[%c0_1, %c0_2], %0 {strides = array<i32>} : memref<1x2048xf32, #tpu.memory_space<vmem>>, vector<1x2048xf32>,
    return
  }
  func.func @transform_0(%arg0: i32) -> (i32, i32) {
    %c0_i32 = arith.constant 0 : i32
    %c0_i32_0 = arith.constant 0 : i32
    return %arg0, %c0_i32 : i32, i32
  }
  func.func @transform_1(%arg0: i32) -> (i32, i32) {
    %c0_i32 = arith.constant 0 : i32
    %c0_i32_0 = arith.constant 0 : i32
    return %arg0, %c0_i32 : i32, i32
  }
}

</mosaic_0001>

<llo_original>
// kernel: pass_forward.1
$region0: #{pass_forward.1}
  #allocation0 [shape = 'u32[]', space=smem, size = 0x4, offset = 0x4, fixed_abs, tag = 'smem constant byte address 0x4 - core index']
  #allocation1 [shape = 'u32[144,128]{1,0:T(1,128)}', space=vmem, size = 0x12000, scoped, tag = 'internal scratch']
  %s0 = inlined_call_operand.vmem [shape: f32[1,2048], index: 0, kind: input, shape index: {}, may-alias: {0,1}]
  %s1 = inlined_call_operand.vmem [shape: f32[1,2048], index: 1, kind: output, shape index: {}, may-alias: {0,1}]
  %s2 = sld [smem:[#allocation0]]
  $region14: #{pass_forward.1} parent=0
    _
  %s4 = ssub.s32 1, %s2
  %s5 = scalar_select 0, %s4, %s2
  // Predicated region
  $region2: #{pass_forward.1} parent=0 // pred_check
    _
  $region3: #{pass_forward.1} parent=0 // pred_check_branch
    %7 = sbr.rel (0) target = $region5
  $region4: #{pass_forward.1} parent=0 // pred_region
    _
  $region5: #{pass_forward.1} parent=0 // pred_fallthru
    _
  %v8 = vld [vmem:[%s0] sm:$0xff]
  %v9 = vld [vmem:[%s0 + $0x8] sm:$0xff]
  %10 = vst [vmem:[%s1] sm:$0xff] %v8
  %11 = vst [vmem:[%s1 + $0x8] sm:$0xff] %v9
  // Predicated region
  $region6: #{pass_forward.1} parent=0 // pred_check
    _
  $region7: #{pass_forward.1} parent=0 // pred_check_branch
    %13 = sbr.rel (0) target = $region9
  $region8: #{pass_forward.1} parent=0 // pred_region
    _
  $region9: #{pass_forward.1} parent=0 // pred_fallthru
    _
  // Predicated region
  $region10: #{pass_forward.1} parent=0 // pred_check
    _
  $region11: #{pass_forward.1} parent=0 // pred_check_branch
    %15 = sbr.rel (0) target = $region13
  $region12: #{pass_forward.1} parent=0 // pred_region
    _
  $region13: #{pass_forward.1} parent=0 // pred_fallthru
    _

</llo_original>
